<compile_context>
chip_gen: v7x
topology: tpu7x:2x2x1
jax: 0.10.0
libtpu: 0.0.40
codegen_flags: <defaults>
</compile_context>

<pallas_src>
import jax
import jax.numpy as jnp
import numpy as np
from jax.experimental import pallas as pl
from jax.experimental.pallas import tpu as pltpu

GAMMA_MIN = -10.0
GAMMA_MAX = 10.0
GRAD_MIN_EPS = 0.001


def _silu(z):
    return z * (1.0 / (1.0 + jnp.exp(-z)))


def _softplus(z):
    # numerically stable softplus
    return jnp.maximum(z, 0.0) + jnp.log1p(jnp.exp(-jnp.abs(z)))


def _gamma_kernel(x_ref, t_ref,
                  w1_ref, b1_ref, w2_ref, b2_ref, wabc_ref, babc_ref,
                  gamma_ref, dg_ref):
    F = gamma_ref.shape[-1]
    w_dtype = w1_ref.dtype

    # ---- MLP trunk (MXU); f32 accumulation regardless of weight dtype ----
    x = x_ref[...]                                           # (TILE_B, 2F)
    h = jnp.dot(x, w1_ref[...], preferred_element_type=jnp.float32) + b1_ref[...]
    h = _silu(h)
    h = jnp.dot(h.astype(w_dtype), w2_ref[...],
                preferred_element_type=jnp.float32) + b2_ref[...]
    h = _silu(h)

    # ---- fused coefficient heads: one (F, 3F) matmul, slice a | b | c ----
    abc = jnp.dot(h.astype(w_dtype), wabc_ref[...],
                  preferred_element_type=jnp.float32) + babc_ref[...]
    a = abc[:, :F]
    b = abc[:, F:2 * F]
    c = GRAD_MIN_EPS + _softplus(abc[:, 2 * F:])

    t = t_ref[...]                                           # (TILE_B, 1) -> lane-broadcast

    # ---- polynomial + t-derivative (Horner form, shared denominators) ----
    a2 = a * a
    ab = a * b
    b2_2ac = b * b + 2.0 * a * c
    bc = b * c
    c2 = c * c

    k5 = a2 * 0.2                 # a^2 / 5
    k4 = ab * 0.5                 # a*b / 2
    k3 = b2_2ac * (1.0 / 3.0)     # (b^2 + 2ac) / 3
    k2 = bc
    k1 = c2 + GRAD_MIN_EPS

    dscale = k5 + k4 + k3 + k2 + c2
    scale = dscale + GRAD_MIN_EPS

    poly = t * (k1 + t * (k2 + t * (k3 + t * (k4 + t * k5))))
    dpoly = c2 + t * (2.0 * bc + t * (b2_2ac + t * (2.0 * ab + t * a2)))

    span = GAMMA_MAX - GAMMA_MIN
    # exact reciprocal keeps the 1e-4 agreement with the f32 reference;
    # approx=True (EUP vrcp) is ~2e-4 relative and would be the faster choice
    # if the tolerance were looser.
    inv_scale = pl.reciprocal(scale, approx=False)
    inv_dscale = pl.reciprocal(dscale, approx=False)

    gamma_ref[...] = GAMMA_MIN + span * (poly * inv_scale)
    dg_ref[...] = jnp.maximum(span * (dpoly * inv_dscale), GRAD_MIN_EPS)


def gamma_mulan_context_forward(t, x, params, gamma_shape):
    """Pallas-backed forward. Returns (gamma, dgamma), each (B, *gamma_shape)."""
    B = x.shape[0]
    F = int(np.prod(gamma_shape))

    w_dtype = params["w1"].dtype
    x_flat = x.reshape(B, -1).astype(w_dtype)                # (B, 2F)
    assert x_flat.shape[1] == 2 * F
    t_flat = t.reshape(B, 1).astype(jnp.float32)             # (B, 1)

    # Batch tiling: pad B up to a sublane multiple and iterate tiles via the
    # grid; weights stay VMEM-resident across steps (constant index_map).
    TILE_B = 128 if B >= 128 else -(-B // 8) * 8
    B_pad = -(-B // TILE_B) * TILE_B
    if B_pad != B:
        x_flat = jnp.pad(x_flat, ((0, B_pad - B), (0, 0)))
        t_flat = jnp.pad(t_flat, ((0, B_pad - B), (0, 0)))
    nb = B_pad // TILE_B

    def resident(arr):
        # full-array block, constant block index -> DMA'd once, stays in VMEM
        return pl.BlockSpec(arr.shape, lambda i: (0,) * arr.ndim)

    in_specs = [
        pl.BlockSpec((TILE_B, 2 * F), lambda i: (i, 0)),     # x tile
        pl.BlockSpec((TILE_B, 1), lambda i: (i, 0)),         # t tile
        resident(params["w1"]), resident(params["b1"]),
        resident(params["w2"]), resident(params["b2"]),
        resident(params["wabc"]), resident(params["babc"]),
    ]
    out_specs = (pl.BlockSpec((TILE_B, F), lambda i: (i, 0)),
                 pl.BlockSpec((TILE_B, F), lambda i: (i, 0)))

    # advisory cost estimate so XLA schedules this small call sensibly
    w_itm = params["w1"].dtype.itemsize
    weight_bytes = (params["w1"].size + params["w2"].size + params["wabc"].size) * w_itm \
                   + (params["b1"].size + params["b2"].size + params["babc"].size) * 4
    io_bytes = x_flat.size * x_flat.dtype.itemsize + t_flat.size * 4 + 2 * B_pad * F * 4
    cost = pl.CostEstimate(
        flops=2 * B_pad * F * (2 * F + F + 3 * F) + 40 * B_pad * F,
        transcendentals=3 * B_pad * F,
        bytes_accessed=weight_bytes + io_bytes,
    )

    # NOTE: at F=128 everything (~0.5 MiB of params) fits VMEM comfortably on
    # all generations; for large n_features prefer bf16 weights and/or raise
    # vmem_limit_bytes (size for v7x's 64 MiB VMEM first).
    gamma, dg = pl.pallas_call(
        _gamma_kernel,
        out_shape=(jax.ShapeDtypeStruct((B_pad, F), jnp.float32),
                   jax.ShapeDtypeStruct((B_pad, F), jnp.float32)),
        grid_spec=pltpu.PrefetchScalarGridSpec(
            num_scalar_prefetch=0,
            grid=(nb,),
            in_specs=in_specs,
            out_specs=out_specs,
        ),
        compiler_params=pltpu.CompilerParams(
            dimension_semantics=("parallel",)),   # batch tiles across TCs on v7x
        cost_estimate=cost,
    )(x_flat, t_flat,
      params["w1"], params["b1"], params["w2"], params["b2"],
      params["wabc"], params["babc"])

    return gamma[:B].reshape(B, *gamma_shape), dg[:B].reshape(B, *gamma_shape)


def init_params(key, n_features):
    """PyTorch nn.Linear-style init; weights stored transposed as (in, out)."""
    def linear(k, fan_in, fan_out):
        kw, kb = jax.random.split(k)
        bound = 1.0 / np.sqrt(fan_in)
        w = jax.random.uniform(kw, (fan_in, fan_out), jnp.float32, -bound, bound)
        b = jax.random.uniform(kb, (1, fan_out), jnp.float32, -bound, bound)
        return w, b

    k1, k2, ka, kb_, kc = jax.random.split(key, 5)
    w1, b1 = linear(k1, 2 * n_features, n_features)
    w2, b2 = linear(k2, n_features, n_features)
    wa, ba = linear(ka, n_features, n_features)
    wb, bb = linear(kb_, n_features, n_features)
    wc, bc = linear(kc, n_features, n_features)
    return dict(w1=w1, b1=b1, w2=w2, b2=b2,
                wa=wa, ba=ba, wb=wb, bb=bb, wc=wc, bc=bc)


def prepare_params(params, matmul_dtype=jnp.float32):
    """One-time fusion of the three head layers; optional bf16 matmul weights."""
    wabc = jnp.concatenate([params["wa"], params["wb"], params["wc"]], axis=1)
    babc = jnp.concatenate([params["ba"], params["bb"], params["bc"]], axis=1)
    return dict(
        w1=params["w1"].astype(matmul_dtype), b1=params["b1"].astype(jnp.float32),
        w2=params["w2"].astype(matmul_dtype), b2=params["b2"].astype(jnp.float32),
        wabc=wabc.astype(matmul_dtype), babc=babc.astype(jnp.float32),
    )


def _reference(t, x, params, gamma_shape):
    """Pure-JAX reference mirroring the PyTorch forward (around_reference=False)."""
    B = x.shape[0]
    xf = x.reshape(B, -1).astype(jnp.float32)
    tf = t.reshape(B, -1).astype(jnp.float32)
    h = jax.nn.silu(xf @ params["w1"] + params["b1"])
    h = jax.nn.silu(h @ params["w2"] + params["b2"])
    a = h @ params["wa"] + params["ba"]
    b = h @ params["wb"] + params["bb"]
    c = 0.001 + jax.nn.softplus(h @ params["wc"] + params["bc"])
    span = GAMMA_MAX - GAMMA_MIN
    poly = (a ** 2 * tf ** 5 / 5.0 + (b ** 2 + 2 * a * c) * tf ** 3 / 3.0
            + a * b * tf ** 4 / 2.0 + b * c * tf ** 2 + (c ** 2 + 0.001) * tf)
    scale = a ** 2 / 5.0 + (b ** 2 + 2 * a * c) / 3.0 + a * b / 2.0 + b * c + (c ** 2 + 0.001)
    gamma = GAMMA_MIN + span * poly / scale
    dpoly = (a ** 2 * tf ** 4 + (b ** 2 + 2 * a * c) * tf ** 2
             + a * b * tf ** 3 * 2.0 + b * c * tf * 2 + c ** 2)
    dscale = a ** 2 / 5.0 + (b ** 2 + 2 * a * c) / 3.0 + a * b / 2.0 + b * c + c ** 2
    dg = jnp.maximum(span * dpoly / dscale, 0.001)
    return gamma.reshape(B, *gamma_shape), dg.reshape(B, *gamma_shape)


if __name__ == "__main__":
    gamma_shape = (8, 16)                    # n_features = 128
    n_features = int(np.prod(gamma_shape))

    key = jax.random.PRNGKey(0)
    kp, kx, kt, kx2, kt2 = jax.random.split(key, 5)
    raw_params = init_params(kp, n_features)
    # matmul_dtype=jnp.bfloat16 halves the weight DMA (per the perf review) but
    # needs a ~1e-2 tolerance vs the f32 reference; keep f32 to stay at 1e-4.
    params = prepare_params(raw_params, matmul_dtype=jnp.float32)

    # --- small batch (module-sized example) ---
    B = 2
    x = jax.random.normal(kx, (B, 2, *gamma_shape), jnp.float32)   # (B, 2, *gamma_shape)
    t = jax.random.uniform(kt, (B,), jnp.float32)                  # diffusion times in (0, 1)

    gamma, dgamma = gamma_mulan_context_forward(t, x, params, gamma_shape)
    gamma, dgamma = jax.block_until_ready((gamma, dgamma))
    g_ref, dg_ref = _reference(t, x, raw_params, gamma_shape)
    assert gamma.shape == (B, *gamma_shape) and dgamma.shape == (B, *gamma_shape)
    np.testing.assert_allclose(np.asarray(gamma), np.asarray(g_ref), rtol=1e-4, atol=1e-4)
    np.testing.assert_allclose(np.asarray(dgamma), np.asarray(dg_ref), rtol=1e-4, atol=1e-4)

    # --- larger batch: exercises batch tiling, padding and the parallel grid ---
    B2 = 200
    x2 = jax.random.normal(kx2, (B2, 2, *gamma_shape), jnp.float32)
    t2 = jax.random.uniform(kt2, (B2,), jnp.float32)
    g2, dg2 = jax.block_until_ready(
        gamma_mulan_context_forward(t2, x2, params, gamma_shape))
    g2_ref, dg2_ref = _reference(t2, x2, raw_params, gamma_shape)
    np.testing.assert_allclose(np.asarray(g2), np.asarray(g2_ref), rtol=1e-4, atol=1e-4)
    np.testing.assert_allclose(np.asarray(dg2), np.asarray(dg2_ref), rtol=1e-4, atol=1e-4)

    print("KERNEL_OK")
</pallas_src>

<mosaic_0001>
module attributes {stable_mosaic.version = 11 : i64} {
  func.func @_gamma_kernel(%arg0: i32, %arg1: memref<8x256xf32, #tpu.memory_space<vmem>>, %arg2: memref<8x1xf32, #tpu.memory_space<vmem>>, %arg3: memref<256x128xf32, #tpu.memory_space<vmem>>, %arg4: memref<1x128xf32, #tpu.memory_space<vmem>>, %arg5: memref<128x128xf32, #tpu.memory_space<vmem>>, %arg6: memref<1x128xf32, #tpu.memory_space<vmem>>, %arg7: memref<128x384xf32, #tpu.memory_space<vmem>>, %arg8: memref<1x384xf32, #tpu.memory_space<vmem>>, %arg9: memref<8x128xf32, #tpu.memory_space<vmem>>, %arg10: memref<8x128xf32, #tpu.memory_space<vmem>>) attributes {dimension_semantics = [#tpu.dimension_semantics<parallel>], iteration_bounds = array<i64: 1>, scalar_prefetch = 0 : i64, scratch_operands = 0 : i64, tpu.core_type = #tpu.core_type<tc>, window_params = [{transform_indices = @transform_0, window_bounds = array<i64: 8, 256>}, {transform_indices = @transform_1, window_bounds = array<i64: 8, 1>}, {pipeline_mode = #tpu.pipeline_mode<synchronous>, transform_indices = @transform_2, window_bounds = array<i64: 256, 128>}, {pipeline_mode = #tpu.pipeline_mode<synchronous>, transform_indices = @transform_3, window_bounds = array<i64: 1, 128>}, {pipeline_mode = #tpu.pipeline_mode<synchronous>, transform_indices = @transform_4, window_bounds = array<i64: 128, 128>}, {pipeline_mode = #tpu.pipeline_mode<synchronous>, transform_indices = @transform_5, window_bounds = array<i64: 1, 128>}, {pipeline_mode = #tpu.pipeline_mode<synchronous>, transform_indices = @transform_6, window_bounds = array<i64: 128, 384>}, {pipeline_mode = #tpu.pipeline_mode<synchronous>, transform_indices = @transform_7, window_bounds = array<i64: 1, 384>}, {transform_indices = @transform_8, window_bounds = array<i64: 8, 128>}, {transform_indices = @transform_9, window_bounds = array<i64: 8, 128>}]} {
    %c0 = arith.constant 0 : index
    %c0_0 = arith.constant 0 : index
    %0 = vector.load %arg1[%c0, %c0_0] : memref<8x256xf32, #tpu.memory_space<vmem>>, vector<8x256xf32>
    %c0_1 = arith.constant 0 : index
    %c0_2 = arith.constant 0 : index
    %1 = vector.load %arg3[%c0_1, %c0_2] : memref<256x128xf32, #tpu.memory_space<vmem>>, vector<256x128xf32>
    %cst = arith.constant dense<0.000000e+00> : vector<8x128xf32>
    %2 = tpu.matmul %0, %1, %cst {dimension_numbers = #tpu.dot_dimension_numbers<[1], [0], [0], [1], [0, 0, 1, 1], [], []>} : vector<8x256xf32>, vector<256x128xf32>, vector<8x128xf32> -> vector<8x128xf32>
    %c0_3 = arith.constant 0 : index
    %c0_4 = arith.constant 0 : index
    %3 = vector.load %arg4[%c0_3, %c0_4] : memref<1x128xf32, #tpu.memory_space<vmem>>, vector<1x128xf32>
    %4 = vector.broadcast %3 : vector<1x128xf32> to vector<8x128xf32>
    %5 = arith.addf %2, %4 : vector<8x128xf32>
    %cst_5 = arith.constant 0.000000e+00 : f32
    %6 = vector.broadcast %cst_5 : f32 to vector<8x128xf32>
    %7 = arith.subf %6, %5 : vector<8x128xf32>
    %8 = math.exp %7 : vector<8x128xf32>
    %cst_6 = arith.constant 1.000000e+00 : f32
    %9 = vector.broadcast %cst_6 : f32 to vector<8x128xf32>
    %10 = arith.addf %9, %8 : vector<8x128xf32>
    %cst_7 = arith.constant 1.000000e+00 : f32
    %11 = vector.broadcast %cst_7 : f32 to vector<8x128xf32>
    %12 = arith.divf %11, %10 : vector<8x128xf32>
    %13 = arith.mulf %5, %12 : vector<8x128xf32>
    %c0_8 = arith.constant 0 : index
    %c0_9 = arith.constant 0 : index
    %14 = vector.load %arg5[%c0_8, %c0_9] : memref<128x128xf32, #tpu.memory_space<vmem>>, vector<128x128xf32>
    %cst_10 = arith.constant dense<0.000000e+00> : vector<8x128xf32>
    %15 = tpu.matmul %13, %14, %cst_10 {dimension_numbers = #tpu.dot_dimension_numbers<[1], [0], [0], [1], [0, 0, 1, 1], [], []>} : vector<8x128xf32>, vector<128x128xf32>, vector<8x128xf32> -> vector<8x128xf32>
    %c0_11 = arith.constant 0 : index
    %c0_12 = arith.constant 0 : index
    %16 = vector.load %arg6[%c0_11, %c0_12] : memref<1x128xf32, #tpu.memory_space<vmem>>, vector<1x128xf32>
    %17 = vector.broadcast %16 : vector<1x128xf32> to vector<8x128xf32>
    %18 = arith.addf %15, %17 : vector<8x128xf32>
    %cst_13 = arith.constant 0.000000e+00 : f32
    %19 = vector.broadcast %cst_13 : f32 to vector<8x128xf32>
    %20 = arith.subf %19, %18 : vector<8x128xf32>
    %21 = math.exp %20 : vector<8x128xf32>
    %cst_14 = arith.constant 1.000000e+00 : f32
    %22 = vector.broadcast %cst_14 : f32 to vector<8x128xf32>
    %23 = arith.addf %22, %21 : vector<8x128xf32>
    %cst_15 = arith.constant 1.000000e+00 : f32
    %24 = vector.broadcast %cst_15 : f32 to vector<8x128xf32>
    %25 = arith.divf %24, %23 : vector<8x128xf32>
    %26 = arith.mulf %18, %25 : vector<8x128xf32>
    %c0_16 = arith.constant 0 : index
    %c0_17 = arith.constant 0 : index
    %27 = vector.load %arg7[%c0_16, %c0_17] : memref<128x384xf32, #tpu.memory_space<vmem>>, vector<128x384xf32>
    %cst_18 = arith.constant dense<0.000000e+00> : vector<8x384xf32>
    %28 = tpu.matmul %26, %27, %cst_18 {dimension_numbers = #tpu.dot_dimension_numbers<[1], [0], [0], [1], [0, 0, 1, 1], [], []>} : vector<8x128xf32>, vector<128x384xf32>, vector<8x384xf32> -> vector<8x384xf32>
    %c0_19 = arith.constant 0 : index
    %c0_20 = arith.constant 0 : index
    %29 = vector.load %arg8[%c0_19, %c0_20] : memref<1x384xf32, #tpu.memory_space<vmem>>, vector<1x384xf32>
    %30 = vector.broadcast %29 : vector<1x384xf32> to vector<8x384xf32>
    %31 = arith.addf %28, %30 : vector<8x384xf32>
    %32 = vector.extract_strided_slice %31 {offsets = [0, 0], sizes = [8, 128], strides = [1, 1]} : vector<8x384xf32> to vector<8x128xf32>
    %33 = vector.extract_strided_slice %31 {offsets = [0, 128], sizes = [8, 128], strides = [1, 1]} : vector<8x384xf32> to vector<8x128xf32>
    %34 = vector.extract_strided_slice %31 {offsets = [0, 256], sizes = [8, 128], strides = [1, 1]} : vector<8x384xf32> to vector<8x128xf32>
    %cst_21 = arith.constant 0.000000e+00 : f32
    %35 = vector.broadcast %cst_21 : f32 to vector<8x128xf32>
    %36 = arith.maximumf %34, %35 : vector<8x128xf32>
    %37 = math.absf %34 : vector<8x128xf32>
    %cst_22 = arith.constant 0.000000e+00 : f32
    %38 = vector.broadcast %cst_22 : f32 to vector<8x128xf32>
    %39 = arith.subf %38, %37 : vector<8x128xf32>
    %40 = math.exp %39 : vector<8x128xf32>
    %41 = math.log1p %40 : vector<8x128xf32>
    %42 = arith.addf %36, %41 : vector<8x128xf32>
    %cst_23 = arith.constant 1.000000e-03 : f32
    %43 = vector.broadcast %cst_23 : f32 to vector<8x128xf32>
    %44 = arith.addf %43, %42 : vector<8x128xf32>
    %c0_24 = arith.constant 0 : index
    %c0_25 = arith.constant 0 : index
    %45 = vector.load %arg2[%c0_24, %c0_25] : memref<8x1xf32, #tpu.memory_space<vmem>>, vector<8x1xf32>
    %46 = arith.mulf %32, %32 : vector<8x128xf32>
    %47 = arith.mulf %32, %33 : vector<8x128xf32>
    %48 = arith.mulf %33, %33 : vector<8x128xf32>
    %cst_26 = arith.constant 2.000000e+00 : f32
    %49 = vector.broadcast %cst_26 : f32 to vector<8x128xf32>
    %50 = arith.mulf %49, %32 : vector<8x128xf32>
    %51 = arith.mulf %50, %44 : vector<8x128xf32>
    %52 = arith.addf %48, %51 : vector<8x128xf32>
    %53 = arith.mulf %33, %44 : vector<8x128xf32>
    %54 = arith.mulf %44, %44 : vector<8x128xf32>
    %cst_27 = arith.constant 2.000000e-01 : f32
    %55 = vector.broadcast %cst_27 : f32 to vector<8x128xf32>
    %56 = arith.mulf %46, %55 : vector<8x128xf32>
    %cst_28 = arith.constant 5.000000e-01 : f32
    %57 = vector.broadcast %cst_28 : f32 to vector<8x128xf32>
    %58 = arith.mulf %47, %57 : vector<8x128xf32>
    %cst_29 = arith.constant 0.333333343 : f32
    %59 = vector.broadcast %cst_29 : f32 to vector<8x128xf32>
    %60 = arith.mulf %52, %59 : vector<8x128xf32>
    %cst_30 = arith.constant 1.000000e-03 : f32
    %61 = vector.broadcast %cst_30 : f32 to vector<8x128xf32>
    %62 = arith.addf %54, %61 : vector<8x128xf32>
    %63 = arith.addf %56, %58 : vector<8x128xf32>
    %64 = arith.addf %63, %60 : vector<8x128xf32>
    %65 = arith.addf %64, %53 : vector<8x128xf32>
    %66 = arith.addf %65, %54 : vector<8x128xf32>
    %cst_31 = arith.constant 1.000000e-03 : f32
    %67 = vector.broadcast %cst_31 : f32 to vector<8x128xf32>
    %68 = arith.addf %66, %67 : vector<8x128xf32>
    %69 = vector.broadcast %45 : vector<8x1xf32> to vector<8x128xf32>
    %70 = arith.mulf %69, %56 : vector<8x128xf32>
    %71 = arith.addf %58, %70 : vector<8x128xf32>
    %72 = vector.broadcast %45 : vector<8x1xf32> to vector<8x128xf32>
    %73 = arith.mulf %72, %71 : vector<8x128xf32>
    %74 = arith.addf %60, %73 : vector<8x128xf32>
    %75 = vector.broadcast %45 : vector<8x1xf32> to vector<8x128xf32>
    %76 = arith.mulf %75, %74 : vector<8x128xf32>
    %77 = arith.addf %53, %76 : vector<8x128xf32>
    %78 = vector.broadcast %45 : vector<8x1xf32> to vector<8x128xf32>
    %79 = arith.mulf %78, %77 : vector<8x128xf32>
    %80 = arith.addf %62, %79 : vector<8x128xf32>
    %81 = vector.broadcast %45 : vector<8x1xf32> to vector<8x128xf32>
    %82 = arith.mulf %81, %80 : vector<8x128xf32>
    %cst_32 = arith.constant 2.000000e+00 : f32
    %83 = vector.broadcast %cst_32 : f32 to vector<8x128xf32>
    %84 = arith.mulf %83, %53 : vector<8x128xf32>
    %cst_33 = arith.constant 2.000000e+00 : f32
    %85 = vector.broadcast %cst_33 : f32 to vector<8x128xf32>
    %86 = arith.mulf %85, %47 : vector<8x128xf32>
    %87 = vector.broadcast %45 : vector<8x1xf32> to vector<8x128xf32>
    %88 = arith.mulf %87, %46 : vector<8x128xf32>
    %89 = arith.addf %86, %88 : vector<8x128xf32>
    %90 = vector.broadcast %45 : vector<8x1xf32> to vector<8x128xf32>
    %91 = arith.mulf %90, %89 : vector<8x128xf32>
    %92 = arith.addf %52, %91 : vector<8x128xf32>
    %93 = vector.broadcast %45 : vector<8x1xf32> to vector<8x128xf32>
    %94 = arith.mulf %93, %92 : vector<8x128xf32>
    %95 = arith.addf %84, %94 : vector<8x128xf32>
    %96 = vector.broadcast %45 : vector<8x1xf32> to vector<8x128xf32>
    %97 = arith.mulf %96, %95 : vector<8x128xf32>
    %98 = arith.addf %54, %97 : vector<8x128xf32>
    %99 = tpu.reciprocal %68 : vector<8x128xf32> -> vector<8x128xf32>
    %100 = tpu.reciprocal %66 : vector<8x128xf32> -> vector<8x128xf32>
    %101 = arith.mulf %82, %99 : vector<8x128xf32>
    %cst_34 = arith.constant 2.000000e+01 : f32
    %102 = vector.broadcast %cst_34 : f32 to vector<8x128xf32>
    %103 = arith.mulf %102, %101 : vector<8x128xf32>
    %cst_35 = arith.constant -1.000000e+01 : f32
    %104 = vector.broadcast %cst_35 : f32 to vector<8x128xf32>
    %105 = arith.addf %104, %103 : vector<8x128xf32>
    %c0_36 = arith.constant 0 : index
    %c0_37 = arith.constant 0 : index
    %106 = vector.load %arg9[%c0_36, %c0_37] : memref<8x128xf32, #tpu.memory_space<vmem>>, vector<8x128xf32>
    tpu.vector_store %arg9[%c0_36, %c0_37], %105 {strides = array<i32>} : memref<8x128xf32, #tpu.memory_space<vmem>>, vector<8x128xf32>,
    %107 = arith.mulf %98, %100 : vector<8x128xf32>
    %cst_38 = arith.constant 2.000000e+01 : f32
    %108 = vector.broadcast %cst_38 : f32 to vector<8x128xf32>
    %109 = arith.mulf %108, %107 : vector<8x128xf32>
    %cst_39 = arith.constant 1.000000e-03 : f32
    %110 = vector.broadcast %cst_39 : f32 to vector<8x128xf32>
    %111 = arith.maximumf %109, %110 : vector<8x128xf32>
    %c0_40 = arith.constant 0 : index
    %c0_41 = arith.constant 0 : index
    %112 = vector.load %arg10[%c0_40, %c0_41] : memref<8x128xf32, #tpu.memory_space<vmem>>, vector<8x128xf32>
    tpu.vector_store %arg10[%c0_40, %c0_41], %111 {strides = array<i32>} : memref<8x128xf32, #tpu.memory_space<vmem>>, vector<8x128xf32>,
    return
  }
  func.func @transform_0(%arg0: i32) -> (i32, i32) {
    %c0_i32 = arith.constant 0 : i32
    %c0_i32_0 = arith.constant 0 : i32
    return %arg0, %c0_i32 : i32, i32
  }
  func.func @transform_1(%arg0: i32) -> (i32, i32) {
    %c0_i32 = arith.constant 0 : i32
    %c0_i32_0 = arith.constant 0 : i32
    return %arg0, %c0_i32 : i32, i32
  }
  func.func @transform_2(%arg0: i32) -> (i32, i32) {
    %c0_i32 = arith.constant 0 : i32
    %c0_i32_0 = arith.constant 0 : i32
    %c0_i32_1 = arith.constant 0 : i32
    return %c0_i32, %c0_i32_0 : i32, i32
  }
  func.func @transform_3(%arg0: i32) -> (i32, i32) {
    %c0_i32 = arith.constant 0 : i32
    %c0_i32_0 = arith.constant 0 : i32
    %c0_i32_1 = arith.constant 0 : i32
    return %c0_i32, %c0_i32_0 : i32, i32
  }
  func.func @transform_4(%arg0: i32) -> (i32, i32) {
    %c0_i32 = arith.constant 0 : i32
    %c0_i32_0 = arith.constant 0 : i32
    %c0_i32_1 = arith.constant 0 : i32
    return %c0_i32, %c0_i32_0 : i32, i32
  }
  func.func @transform_5(%arg0: i32) -> (i32, i32) {
    %c0_i32 = arith.constant 0 : i32
    %c0_i32_0 = arith.constant 0 : i32
    %c0_i32_1 = arith.constant 0 : i32
    return %c0_i32, %c0_i32_0 : i32, i32
  }
  func.func @transform_6(%arg0: i32) -> (i32, i32) {
    %c0_i32 = arith.constant 0 : i32
    %c0_i32_0 = arith.constant 0 : i32
    %c0_i32_1 = arith.constant 0 : i32
    return %c0_i32, %c0_i32_0 : i32, i32
  }
  func.func @transform_7(%arg0: i32) -> (i32, i32) {
    %c0_i32 = arith.constant 0 : i32
    %c0_i32_0 = arith.constant 0 : i32
    %c0_i32_1 = arith.constant 0 : i32
    return %c0_i32, %c0_i32_0 : i32, i32
  }
  func.func @transform_8(%arg0: i32) -> (i32, i32) {
    %c0_i32 = arith.constant 0 : i32
    %c0_i32_0 = arith.constant 0 : i32
    return %arg0, %c0_i32 : i32, i32
  }
  func.func @transform_9(%arg0: i32) -> (i32, i32) {
    %c0_i32 = arith.constant 0 : i32
    %c0_i32_0 = arith.constant 0 : i32
    return %arg0, %c0_i32 : i32, i32
  }
}

</mosaic_0001>

<llo_original>
// kernel: tpu_custom_call.1
$region0: #{tpu_custom_call.1}
  #allocation0 [shape = 'u32[]', space=smem, size = 0x4, offset = 0x4, fixed_abs, tag = 'smem constant byte address 0x4 - core index']
  #allocation1 [shape = 'u32[144,128]{1,0:T(1,128)}', space=vmem, size = 0x12000, scoped, tag = 'internal scratch']
  %s0 = inlined_call_operand.hbm [shape: f32[8,256], index: 0, kind: input, shape index: {}]
  %s1 = inlined_call_operand.vmem [shape: f32[8,1], index: 1, kind: input, shape index: {}]
  %s2 = inlined_call_operand.hbm [shape: f32[256,128], index: 2, kind: input, shape index: {}]
  %s3 = inlined_call_operand.vmem [shape: f32[1,128], index: 3, kind: input, shape index: {}]
  %s4 = inlined_call_operand.hbm [shape: f32[128,128], index: 4, kind: input, shape index: {}]
  %s5 = inlined_call_operand.vmem [shape: f32[1,128], index: 5, kind: input, shape index: {}]
  %s6 = inlined_call_operand.hbm [shape: f32[128,384], index: 6, kind: input, shape index: {}]
  %s7 = inlined_call_operand.vmem [shape: f32[1,384], index: 7, kind: input, shape index: {}]
  %s8 = inlined_call_operand.hbm [shape: f32[8,128], index: 8, kind: output, shape index: {0}]
  %s9 = inlined_call_operand.hbm [shape: f32[8,128], index: 9, kind: output, shape index: {1}]
  %10 = xla_tuple %s8, %s9
  %s11 = sld [smem:[#allocation0]]
  $region66: #{tpu_custom_call.1} parent=0
    _
  %s13 = ssub.s32 1, %s11
  %s14 = scalar_select 0, %s13, %s11
  $region1: #{tpu_custom_call.1} parent=0
    #allocation2 [shape = 'u8[8192]{0}', space=vmem, size = 0x2000, scoped, tag = 'input window, operand 0, single buffered']
    #allocation3 [shape = 's32[1]{0}', space=sflag, size = 0x4, scoped, tag = 'scoped memory for tpu_custom_call.1']
    #allocation4 [shape = 's32[1]{0}', space=sflag, size = 0x4, scoped, tag = 'scoped memory for tpu_custom_call.1']
    #allocation5 [shape = 'u8[131072]{0}', space=vmem, size = 0x20000, scoped, tag = 'input window, operand 2, single buffered']
    #allocation6 [shape = 's32[1]{0}', space=sflag, size = 0x4, scoped, tag = 'scoped memory for tpu_custom_call.1']
    #allocation7 [shape = 'u8[65536]{0}', space=vmem, size = 0x10000, scoped, tag = 'input window, operand 4, single buffered']
    #allocation8 [shape = 'u8[196608]{0}', space=vmem, size = 0x30000, scoped, tag = 'input window, operand 6, single buffered']
    #allocation9 [shape = 's32[1]{0}', space=sflag, size = 0x4, scoped, tag = 'scoped memory for tpu_custom_call.1']
    #allocation10 [shape = 'u8[4096]{0}', space=vmem, size = 0x1000, scoped, tag = 'output window, operand 0, single buffered']
    #allocation11 [shape = 'u8[4096]{0}', space=vmem, size = 0x1000, scoped, tag = 'output window, operand 1, single buffered']
    #allocation12 [shape = 's32[1]{0}', space=sflag, size = 0x4, scoped, tag = 'scoped memory for tpu_custom_call.1']
    %15 = vsyncpa [#allocation3], 0
    %16 = vsyncpa [#allocation6], 0
    %17 = vsyncpa [#allocation9], 0
    %18 = vsyncpa [#allocation4], 0
    %19 = vsyncpa [#allocation12], 0
    // Predicated region
    $region2: #{tpu_custom_call.1} parent=1 // pred_check
      _
    $region3: #{tpu_custom_call.1} parent=1 // pred_check_branch
      %21 = sbr.rel (0) target = $region5
    $region4: #{tpu_custom_call.1} parent=1 // pred_region
      %s23 = ssub.s32 256, 256
      %24 = vsyncadd [#allocation3], %s23
      %s26 = sshll.u32 [#allocation2], 4
      %s27 = int_to_ptr.vmem [resolvable:$true] %s26
      %29 = dma.hbm_to_vmem [thread:$0]  %s0, 256, %s27, [#allocation3]
    $region5: #{tpu_custom_call.1} parent=1 // pred_fallthru
      _
    // Predicated region
    $region6: #{tpu_custom_call.1} parent=1 // pred_check
      _
    $region7: #{tpu_custom_call.1} parent=1 // pred_check_branch
      %31 = sbr.rel (0) target = $region9
    $region8: #{tpu_custom_call.1} parent=1 // pred_region
      _
    $region9: #{tpu_custom_call.1} parent=1 // pred_fallthru
      _
    // Predicated region
    $region10: #{tpu_custom_call.1} parent=1 // pred_check
      _
    $region11: #{tpu_custom_call.1} parent=1 // pred_check_branch
      %33 = sbr.rel (0) target = $region13
    $region12: #{tpu_custom_call.1} parent=1 // pred_region
      %s35 = ssub.s32 4096, 4096
      %36 = vsyncadd [#allocation6], %s35
      %s37 = sshll.u32 [#allocation5], 4
      %s38 = int_to_ptr.vmem [resolvable:$true] %s37
      %43 = dma.hbm_to_vmem [thread:$0]  %s2, 4096, %s38, [#allocation6], 128, 128, 8
    $region13: #{tpu_custom_call.1} parent=1 // pred_fallthru
      _
    // Predicated region
    $region14: #{tpu_custom_call.1} parent=1 // pred_check
      _
    $region15: #{tpu_custom_call.1} parent=1 // pred_check_branch
      %45 = sbr.rel (0) target = $region17
    $region16: #{tpu_custom_call.1} parent=1 // pred_region
      _
    $region17: #{tpu_custom_call.1} parent=1 // pred_fallthru
      _
    // Predicated region
    $region18: #{tpu_custom_call.1} parent=1 // pred_check
      _
    $region19: #{tpu_custom_call.1} parent=1 // pred_check_branch
      %47 = sbr.rel (0) target = $region21
    $region20: #{tpu_custom_call.1} parent=1 // pred_region
      %s49 = ssub.s32 2048, 2048
      %50 = vsyncadd [#allocation6], %s49
      %s51 = sshll.u32 [#allocation7], 4
      %s52 = int_to_ptr.vmem [resolvable:$true] %s51
      %57 = dma.hbm_to_vmem [thread:$0]  %s4, 2048, %s52, [#allocation6], 128, 128, 8
    $region21: #{tpu_custom_call.1} parent=1 // pred_fallthru
      _
    // Predicated region
    $region22: #{tpu_custom_call.1} parent=1 // pred_check
      _
    $region23: #{tpu_custom_call.1} parent=1 // pred_check_branch
      %59 = sbr.rel (0) target = $region25
    $region24: #{tpu_custom_call.1} parent=1 // pred_region
      _
    $region25: #{tpu_custom_call.1} parent=1 // pred_fallthru
      _
    // Predicated region
    $region26: #{tpu_custom_call.1} parent=1 // pred_check
      _
    $region27: #{tpu_custom_call.1} parent=1 // pred_check_branch
      %61 = sbr.rel (0) target = $region29
    $region28: #{tpu_custom_call.1} parent=1 // pred_region
      %s63 = ssub.s32 6144, 6144
      %64 = vsyncadd [#allocation9], %s63
      %s65 = sshll.u32 [#allocation8], 4
      %s66 = int_to_ptr.vmem [resolvable:$true] %s65
      %71 = dma.hbm_to_vmem [thread:$0]  %s6, 6144, %s66, [#allocation9], 384, 384, 24
    $region29: #{tpu_custom_call.1} parent=1 // pred_fallthru
      _
    // Predicated region
    $region30: #{tpu_custom_call.1} parent=1 // pred_check
      _
    $region31: #{tpu_custom_call.1} parent=1 // pred_check_branch
      %73 = sbr.rel (0) target = $region33
    $region32: #{tpu_custom_call.1} parent=1 // pred_region
      _
    $region33: #{tpu_custom_call.1} parent=1 // pred_fallthru
      _
    // Predicated region
    $region34: #{tpu_custom_call.1} parent=1 // pred_check
      _
    $region35: #{tpu_custom_call.1} parent=1 // pred_check_branch
      %75 = sbr.rel (0) target = $region37
    $region36: #{tpu_custom_call.1} parent=1 // pred_region
      %76 = dma.done [#allocation3], 256
    $region37: #{tpu_custom_call.1} parent=1 // pred_fallthru
      _
    // Predicated region
    $region38: #{tpu_custom_call.1} parent=1 // pred_check
      _
    $region39: #{tpu_custom_call.1} parent=1 // pred_check_branch
      %78 = sbr.rel (0) target = $region41
    $region40: #{tpu_custom_call.1} parent=1 // pred_region
      %79 = dma.done [#allocation6], 4096
    $region41: #{tpu_custom_call.1} parent=1 // pred_fallthru
      _
    // Predicated region
    $region42: #{tpu_custom_call.1} parent=1 // pred_check
      _
    $region43: #{tpu_custom_call.1} parent=1 // pred_check_branch
      %81 = sbr.rel (0) target = $region45
    $region44: #{tpu_custom_call.1} parent=1 // pred_region
      %82 = dma.done [#allocation6], 2048
    $region45: #{tpu_custom_call.1} parent=1 // pred_fallthru
      _
    // Predicated region
    $region46: #{tpu_custom_call.1} parent=1 // pred_check
      _
    $region47: #{tpu_custom_call.1} parent=1 // pred_check_branch
      %84 = sbr.rel (0) target = $region49
    $region48: #{tpu_custom_call.1} parent=1 // pred_region
      %85 = dma.done [#allocation9], 6144
    $region49: #{tpu_custom_call.1} parent=1 // pred_fallthru
      _
    %v86 = vld [vmem:[#allocation2] sm:$0xff]
    %v87 = vld [vmem:[#allocation2 + $0x8] sm:$0xff]
    %v88 = vld [vmem:[#allocation5] sm:$0xff]
    %v89 = vld [vmem:[#allocation5 + $0x8] sm:$0xff]
    %v90 = vld [vmem:[#allocation5 + $0x10] sm:$0xff]
    %v91 = vld [vmem:[#allocation5 + $0x18] sm:$0xff]
    %v92 = vld [vmem:[#allocation5 + $0x20] sm:$0xff]
    %v93 = vld [vmem:[#allocation5 + $0x28] sm:$0xff]
    %v94 = vld [vmem:[#allocation5 + $0x30] sm:$0xff]
    %v95 = vld [vmem:[#allocation5 + $0x38] sm:$0xff]
    %v96 = vld [vmem:[#allocation5 + $0x40] sm:$0xff]
    %v97 = vld [vmem:[#allocation5 + $0x48] sm:$0xff]
    %v98 = vld [vmem:[#allocation5 + $0x50] sm:$0xff]
    %v99 = vld [vmem:[#allocation5 + $0x58] sm:$0xff]
    %v100 = vld [vmem:[#allocation5 + $0x60] sm:$0xff]
    %v101 = vld [vmem:[#allocation5 + $0x68] sm:$0xff]
    %v102 = vld [vmem:[#allocation5 + $0x70] sm:$0xff]
    %v103 = vld [vmem:[#allocation5 + $0x78] sm:$0xff]
    %v104 = vld [vmem:[#allocation5 + $0x80] sm:$0xff]
    %v105 = vld [vmem:[#allocation5 + $0x88] sm:$0xff]
    %v106 = vld [vmem:[#allocation5 + $0x90] sm:$0xff]
    %v107 = vld [vmem:[#allocation5 + $0x98] sm:$0xff]
    %v108 = vld [vmem:[#allocation5 + $0xa0] sm:$0xff]
    %v109 = vld [vmem:[#allocation5 + $0xa8] sm:$0xff]
    %v110 = vld [vmem:[#allocation5 + $0xb0] sm:$0xff]
    %v111 = vld [vmem:[#allocation5 + $0xb8] sm:$0xff]
    %v112 = vld [vmem:[#allocation5 + $0xc0] sm:$0xff]
    %v113 = vld [vmem:[#allocation5 + $0xc8] sm:$0xff]
    %v114 = vld [vmem:[#allocation5 + $0xd0] sm:$0xff]
    %v115 = vld [vmem:[#allocation5 + $0xd8] sm:$0xff]
    %v116 = vld [vmem:[#allocation5 + $0xe0] sm:$0xff]
    %v117 = vld [vmem:[#allocation5 + $0xe8] sm:$0xff]
    %v118 = vld [vmem:[#allocation5 + $0xf0] sm:$0xff]
    %v119 = vld [vmem:[#allocation5 + $0xf8] sm:$0xff]
    %v120 = vld [vmem:[%s3] sm:$0x1]
    %v122 = vlaneseq
    %v123 = vshrl.u32 %v122, 7
    %v124 = vsub.s32 0, %v123
    %v125 = vrot.slane %v120, %v124
    %127 = vmatprep.subr.mxu0 0.0
    %128 = vmatpush1.msra.mxu0 %v88
    %129 = vmatprep.subr.mxu0 0.0
    %130 = vmatpush1.msra.mxu0 %v89
    %131 = vmatprep.subr.mxu0 0.0
    %132 = vmatpush1.msra.mxu0 %v90
    %133 = vmatprep.subr.mxu0 0.0
    %134 = vmatpush1.msra.mxu0 %v91
    %135 = vmatprep.subr.mxu0 0.0
    %136 = vmatpush1.msra.mxu0 %v92
    %137 = vmatprep.subr.mxu0 0.0
    %138 = vmatpush1.msra.mxu0 %v93
    %139 = vmatprep.subr.mxu0 0.0
    %140 = vmatpush1.msra.mxu0 %v94
    %141 = vmatprep.subr.mxu0 0.0
    %142 = vmatpush1.msra.mxu0 %v95
    %143 = vmatprep.subr.mxu0 0.0
    %144 = vmatpush1.msra.mxu0 %v96
    %145 = vmatprep.subr.mxu0 0.0
    %146 = vmatpush1.msra.mxu0 %v97
    %147 = vmatprep.subr.mxu0 0.0
    %148 = vmatpush1.msra.mxu0 %v98
    %149 = vmatprep.subr.mxu0 0.0
    %150 = vmatpush1.msra.mxu0 %v99
    %151 = vmatprep.subr.mxu0 0.0
    %152 = vmatpush1.msra.mxu0 %v100
    %153 = vmatprep.subr.mxu0 0.0
    %154 = vmatpush1.msra.mxu0 %v101
    %155 = vmatprep.subr.mxu0 0.0
    %156 = vmatpush1.msra.mxu0 %v102
    %157 = vmatprep.subr.mxu0 0.0
    %158 = vmatpush1.msra.mxu0 %v103
    %159 = vmatprep.subr.mxu0 0.0
    %160 = vmatpush1.msra.mxu0 %v104
    %161 = vmatprep.subr.mxu0 0.0
    %162 = vmatpush1.msra.mxu0 %v105
    %163 = vmatprep.subr.mxu0 0.0
    %164 = vmatpush1.msra.mxu0 %v106
    %165 = vmatprep.subr.mxu0 0.0
    %166 = vmatpush1.msra.mxu0 %v107
    %167 = vmatprep.subr.mxu0 0.0
    %168 = vmatpush1.msra.mxu0 %v108
    %169 = vmatprep.subr.mxu0 0.0
    %170 = vmatpush1.msra.mxu0 %v109
    %171 = vmatprep.subr.mxu0 0.0
    %172 = vmatpush1.msra.mxu0 %v110
    %173 = vmatprep.subr.mxu0 0.0
    %174 = vmatpush1.msra.mxu0 %v111
    %175 = vmatprep.subr.mxu0 0.0
    %176 = vmatpush1.msra.mxu0 %v112
    %177 = vmatprep.subr.mxu0 0.0
    %178 = vmatpush1.msra.mxu0 %v113
    %179 = vmatprep.subr.mxu0 0.0
    %180 = vmatpush1.msra.mxu0 %v114
    %181 = vmatprep.subr.mxu0 0.0
    %182 = vmatpush1.msra.mxu0 %v115
    %183 = vmatprep.subr.mxu0 0.0
    %184 = vmatpush1.msra.mxu0 %v116
    %185 = vmatprep.subr.mxu0 0.0
    %186 = vmatpush1.msra.mxu0 %v117
    %187 = vmatprep.subr.mxu0 0.0
    %188 = vmatpush1.msra.mxu0 %v118
    %189 = vmatprep.subr.mxu0 0.0
    %190 = vmatpush1.msra.mxu0 %v119
    %191 = vmatprep.mubr.f32.mxu0 %v87
    %192 = vmatmul.mubr.f32.gmra.mrb[0].mxu0 %v86
    %v193 = vpop.f32.mrb[0].mxu0
    %v194 = vadd.f32 %v125, %v193
    %v195 = vpop.f32.mrb[0].mxu0
    %196 = vdwg.mxu0
    %v197 = vsub.f32 0.0, %v194
    %v198 = vmul.f32 %v197, 1.442695
    %v199 = vpow.pop %v198
    %v200 = vadd.f32 %v199, 1.0
    %v201 = vrcp.pop %v200
    %v202 = vmul.f32 1.0, %v201
    %v203 = vmul.f32 %v194, %v202
    %v204 = vld [vmem:[#allocation7] sm:$0xff]
    %v205 = vld [vmem:[#allocation7 + $0x8] sm:$0xff]
    %v206 = vld [vmem:[#allocation7 + $0x10] sm:$0xff]
    %v207 = vld [vmem:[#allocation7 + $0x18] sm:$0xff]
    %v208 = vld [vmem:[#allocation7 + $0x20] sm:$0xff]
    %v209 = vld [vmem:[#allocation7 + $0x28] sm:$0xff]
    %v210 = vld [vmem:[#allocation7 + $0x30] sm:$0xff]
    %v211 = vld [vmem:[#allocation7 + $0x38] sm:$0xff]
    %v212 = vld [vmem:[#allocation7 + $0x40] sm:$0xff]
    %v213 = vld [vmem:[#allocation7 + $0x48] sm:$0xff]
    %v214 = vld [vmem:[#allocation7 + $0x50] sm:$0xff]
    %v215 = vld [vmem:[#allocation7 + $0x58] sm:$0xff]
    %v216 = vld [vmem:[#allocation7 + $0x60] sm:$0xff]
    %v217 = vld [vmem:[#allocation7 + $0x68] sm:$0xff]
    %v218 = vld [vmem:[#allocation7 + $0x70] sm:$0xff]
    %v219 = vld [vmem:[#allocation7 + $0x78] sm:$0xff]
    %v220 = vld [vmem:[%s5] sm:$0x1]
    %v222 = vlaneseq
    %v223 = vshrl.u32 %v222, 7
    %v224 = vsub.s32 0, %v223
    %v225 = vrot.slane %v220, %v224
    %227 = vmatprep.subr.mxu0 0.0
    %228 = vmatpush1.msra.mxu0 %v204
    %229 = vmatprep.subr.mxu0 0.0
    %230 = vmatpush1.msra.mxu0 %v205
    %231 = vmatprep.subr.mxu0 0.0
    %232 = vmatpush1.msra.mxu0 %v206
    %233 = vmatprep.subr.mxu0 0.0
    %234 = vmatpush1.msra.mxu0 %v207
    %235 = vmatprep.subr.mxu0 0.0
    %236 = vmatpush1.msra.mxu0 %v208
    %237 = vmatprep.subr.mxu0 0.0
    %238 = vmatpush1.msra.mxu0 %v209
    %239 = vmatprep.subr.mxu0 0.0
    %240 = vmatpush1.msra.mxu0 %v210
    %241 = vmatprep.subr.mxu0 0.0
    %242 = vmatpush1.msra.mxu0 %v211
    %243 = vmatprep.subr.mxu0 0.0
    %244 = vmatpush1.msra.mxu0 %v212
    %245 = vmatprep.subr.mxu0 0.0
    %246 = vmatpush1.msra.mxu0 %v213
    %247 = vmatprep.subr.mxu0 0.0
    %248 = vmatpush1.msra.mxu0 %v214
    %249 = vmatprep.subr.mxu0 0.0
    %250 = vmatpush1.msra.mxu0 %v215
    %251 = vmatprep.subr.mxu0 0.0
    %252 = vmatpush1.msra.mxu0 %v216
    %253 = vmatprep.subr.mxu0 0.0
    %254 = vmatpush1.msra.mxu0 %v217
    %255 = vmatprep.subr.mxu0 0.0
    %256 = vmatpush1.msra.mxu0 %v218
    %257 = vmatprep.subr.mxu0 0.0
    %258 = vmatpush1.msra.mxu0 %v219
    %259 = vmatprep.subr.mxu0 0.0
    %260 = vmatpush1.msra.mxu0 0.0
    %261 = vmatprep.subr.mxu0 0.0
    %262 = vmatpush1.msra.mxu0 0.0
    %263 = vmatprep.subr.mxu0 0.0
    %264 = vmatpush1.msra.mxu0 0.0
    %265 = vmatprep.subr.mxu0 0.0
    %266 = vmatpush1.msra.mxu0 0.0
    %267 = vmatprep.subr.mxu0 0.0
    %268 = vmatpush1.msra.mxu0 0.0
    %269 = vmatprep.subr.mxu0 0.0
    %270 = vmatpush1.msra.mxu0 0.0
    %271 = vmatprep.subr.mxu0 0.0
    %272 = vmatpush1.msra.mxu0 0.0
    %273 = vmatprep.subr.mxu0 0.0
    %274 = vmatpush1.msra.mxu0 0.0
    %275 = vmatprep.subr.mxu0 0.0
    %276 = vmatpush1.msra.mxu0 0.0
    %277 = vmatprep.subr.mxu0 0.0
    %278 = vmatpush1.msra.mxu0 0.0
    %279 = vmatprep.subr.mxu0 0.0
    %280 = vmatpush1.msra.mxu0 0.0
    %281 = vmatprep.subr.mxu0 0.0
    %282 = vmatpush1.msra.mxu0 0.0
    %283 = vmatprep.subr.mxu0 0.0
    %284 = vmatpush1.msra.mxu0 0.0
    %285 = vmatprep.subr.mxu0 0.0
    %286 = vmatpush1.msra.mxu0 0.0
    %287 = vmatprep.subr.mxu0 0.0
    %288 = vmatpush1.msra.mxu0 0.0
    %289 = vmatprep.subr.mxu0 0.0
    %290 = vmatpush1.msra.mxu0 0.0
    %291 = vmatprep.mubr.f32.mxu0 0.0
    %292 = vmatmul.mubr.f32.gmra.mrb[0].mxu0 %v203
    %v293 = vpop.f32.mrb[0].mxu0
    %v294 = vadd.f32 %v225, %v293
    %v295 = vpop.f32.mrb[0].mxu0
    %296 = vdwg.mxu0
    %v297 = vsub.f32 0.0, %v294
    %v298 = vmul.f32 %v297, 1.442695
    %v299 = vpow.pop %v298
    %v300 = vadd.f32 %v299, 1.0
    %v301 = vrcp.pop %v300
    %v302 = vmul.f32 1.0, %v301
    %v303 = vmul.f32 %v294, %v302
    %v304 = vld [vmem:[#allocation8] sm:$0xff]
    %v305 = vld [vmem:[#allocation8 + $0x8] sm:$0xff]
    %v306 = vld [vmem:[#allocation8 + $0x10] sm:$0xff]
    %v307 = vld [vmem:[#allocation8 + $0x18] sm:$0xff]
    %v308 = vld [vmem:[#allocation8 + $0x20] sm:$0xff]
    %v309 = vld [vmem:[#allocation8 + $0x28] sm:$0xff]
    %v310 = vld [vmem:[#allocation8 + $0x30] sm:$0xff]
    %v311 = vld [vmem:[#allocation8 + $0x38] sm:$0xff]
    %v312 = vld [vmem:[#allocation8 + $0x40] sm:$0xff]
    %v313 = vld [vmem:[#allocation8 + $0x48] sm:$0xff]
    %v314 = vld [vmem:[#allocation8 + $0x50] sm:$0xff]
    %v315 = vld [vmem:[#allocation8 + $0x58] sm:$0xff]
    %v316 = vld [vmem:[#allocation8 + $0x60] sm:$0xff]
    %v317 = vld [vmem:[#allocation8 + $0x68] sm:$0xff]
    %v318 = vld [vmem:[#allocation8 + $0x70] sm:$0xff]
    %v319 = vld [vmem:[#allocation8 + $0x78] sm:$0xff]
    %v320 = vld [vmem:[#allocation8 + $0x80] sm:$0xff]
    %v321 = vld [vmem:[#allocation8 + $0x88] sm:$0xff]
    %v322 = vld [vmem:[#allocation8 + $0x90] sm:$0xff]
    %v323 = vld [vmem:[#allocation8 + $0x98] sm:$0xff]
    %v324 = vld [vmem:[#allocation8 + $0xa0] sm:$0xff]
    %v325 = vld [vmem:[#allocation8 + $0xa8] sm:$0xff]
    %v326 = vld [vmem:[#allocation8 + $0xb0] sm:$0xff]
    %v327 = vld [vmem:[#allocation8 + $0xb8] sm:$0xff]
    %v328 = vld [vmem:[#allocation8 + $0xc0] sm:$0xff]
    %v329 = vld [vmem:[#allocation8 + $0xc8] sm:$0xff]
    %v330 = vld [vmem:[#allocation8 + $0xd0] sm:$0xff]
    %v331 = vld [vmem:[#allocation8 + $0xd8] sm:$0xff]
    %v332 = vld [vmem:[#allocation8 + $0xe0] sm:$0xff]
    %v333 = vld [vmem:[#allocation8 + $0xe8] sm:$0xff]
    %v334 = vld [vmem:[#allocation8 + $0xf0] sm:$0xff]
    %v335 = vld [vmem:[#allocation8 + $0xf8] sm:$0xff]
    %v336 = vld [vmem:[#allocation8 + $0x100] sm:$0xff]
    %v337 = vld [vmem:[#allocation8 + $0x108] sm:$0xff]
    %v338 = vld [vmem:[#allocation8 + $0x110] sm:$0xff]
    %v339 = vld [vmem:[#allocation8 + $0x118] sm:$0xff]
    %v340 = vld [vmem:[#allocation8 + $0x120] sm:$0xff]
    %v341 = vld [vmem:[#allocation8 + $0x128] sm:$0xff]
    %v342 = vld [vmem:[#allocation8 + $0x130] sm:$0xff]
    %v343 = vld [vmem:[#allocation8 + $0x138] sm:$0xff]
    %v344 = vld [vmem:[#allocation8 + $0x140] sm:$0xff]
    %v345 = vld [vmem:[#allocation8 + $0x148] sm:$0xff]
    %v346 = vld [vmem:[#allocation8 + $0x150] sm:$0xff]
    %v347 = vld [vmem:[#allocation8 + $0x158] sm:$0xff]
    %v348 = vld [vmem:[#allocation8 + $0x160] sm:$0xff]
    %v349 = vld [vmem:[#allocation8 + $0x168] sm:$0xff]
    %v350 = vld [vmem:[#allocation8 + $0x170] sm:$0xff]
    %v351 = vld [vmem:[#allocation8 + $0x178] sm:$0xff]
    %v352 = vld [vmem:[%s7] sm:$0x7]
    %v354 = vlaneseq
    %v355 = vshrl.u32 %v354, 7
    %v356 = vsub.s32 0, %v355
    %v357 = vrot.slane %v352, %v356
    %v358 = vlaneseq
    %v359 = vshrl.u32 %v358, 7
    %v360 = vsub.s32 1, %v359
    %v361 = vrot.slane %v352, %v360
    %v362 = vlaneseq
    %v363 = vshrl.u32 %v362, 7
    %v364 = vsub.s32 2, %v363
    %v365 = vrot.slane %v352, %v364
    %369 = vmatprep.subr.mxu0 %v305
    %370 = vmatpush1.msra.mxu0 %v304
    %371 = vmatprep.subr.mxu0 %v308
    %372 = vmatpush1.msra.mxu0 %v307
    %373 = vmatprep.subr.mxu0 %v311
    %374 = vmatpush1.msra.mxu0 %v310
    %375 = vmatprep.subr.mxu0 %v314
    %376 = vmatpush1.msra.mxu0 %v313
    %377 = vmatprep.subr.mxu0 %v317
    %378 = vmatpush1.msra.mxu0 %v316
    %379 = vmatprep.subr.mxu0 %v320
    %380 = vmatpush1.msra.mxu0 %v319
    %381 = vmatprep.subr.mxu0 %v323
    %382 = vmatpush1.msra.mxu0 %v322
    %383 = vmatprep.subr.mxu0 %v326
    %384 = vmatpush1.msra.mxu0 %v325
    %385 = vmatprep.subr.mxu0 %v329
    %386 = vmatpush1.msra.mxu0 %v328
    %387 = vmatprep.subr.mxu0 %v332
    %388 = vmatpush1.msra.mxu0 %v331
    %389 = vmatprep.subr.mxu0 %v335
    %390 = vmatpush1.msra.mxu0 %v334
    %391 = vmatprep.subr.mxu0 %v338
    %392 = vmatpush1.msra.mxu0 %v337
    %393 = vmatprep.subr.mxu0 %v341
    %394 = vmatpush1.msra.mxu0 %v340
    %395 = vmatprep.subr.mxu0 %v344
    %396 = vmatpush1.msra.mxu0 %v343
    %397 = vmatprep.subr.mxu0 %v347
    %398 = vmatpush1.msra.mxu0 %v346
    %399 = vmatprep.subr.mxu0 %v350
    %400 = vmatpush1.msra.mxu0 %v349
    %401 = vmatprep.subr.mxu0 0.0
    %402 = vmatpush1.msra.mxu0 0.0
    %403 = vmatprep.subr.mxu0 0.0
    %404 = vmatpush1.msra.mxu0 0.0
    %405 = vmatprep.subr.mxu0 0.0
    %406 = vmatpush1.msra.mxu0 0.0
    %407 = vmatprep.subr.mxu0 0.0
    %408 = vmatpush1.msra.mxu0 0.0
    %409 = vmatprep.subr.mxu0 0.0
    %410 = vmatpush1.msra.mxu0 0.0
    %411 = vmatprep.subr.mxu0 0.0
    %412 = vmatpush1.msra.mxu0 0.0
    %413 = vmatprep.subr.mxu0 0.0
    %414 = vmatpush1.msra.mxu0 0.0
    %415 = vmatprep.subr.mxu0 0.0
    %416 = vmatpush1.msra.mxu0 0.0
    %417 = vmatprep.subr.mxu0 0.0
    %418 = vmatpush1.msra.mxu0 0.0
    %419 = vmatprep.subr.mxu0 0.0
    %420 = vmatpush1.msra.mxu0 0.0
    %421 = vmatprep.subr.mxu0 0.0
    %422 = vmatpush1.msra.mxu0 0.0
    %423 = vmatprep.subr.mxu0 0.0
    %424 = vmatpush1.msra.mxu0 0.0
    %425 = vmatprep.subr.mxu0 0.0
    %426 = vmatpush1.msra.mxu0 0.0
    %427 = vmatprep.subr.mxu0 0.0
    %428 = vmatpush1.msra.mxu0 0.0
    %429 = vmatprep.subr.mxu0 0.0
    %430 = vmatpush1.msra.mxu0 0.0
    %431 = vmatprep.subr.mxu0 0.0
    %432 = vmatpush1.msra.mxu0 0.0
    %433 = vmatprep.mubr.f32.mxu0 0.0
    %434 = vmatmul.mubr.f32.gmra.mrb[0].mxu0 %v303
    %v435 = vpop.f32.mrb[0].mxu0
    %v436 = vadd.f32 %v357, %v435
    %v437 = vpop.f32.mrb[0].mxu0
    %v438 = vadd.f32 %v361, %v437
    %439 = vdwg.mxu0
    %440 = vmatprep.subr.mxu0 0.0
    %441 = vmatpush1.msra.mxu0 %v306
    %442 = vmatprep.subr.mxu0 0.0
    %443 = vmatpush1.msra.mxu0 %v309
    %444 = vmatprep.subr.mxu0 0.0
    %445 = vmatpush1.msra.mxu0 %v312
    %446 = vmatprep.subr.mxu0 0.0
    %447 = vmatpush1.msra.mxu0 %v315
    %448 = vmatprep.subr.mxu0 0.0
    %449 = vmatpush1.msra.mxu0 %v318
    %450 = vmatprep.subr.mxu0 0.0
    %451 = vmatpush1.msra.mxu0 %v321
    %452 = vmatprep.subr.mxu0 0.0
    %453 = vmatpush1.msra.mxu0 %v324
    %454 = vmatprep.subr.mxu0 0.0
    %455 = vmatpush1.msra.mxu0 %v327
    %456 = vmatprep.subr.mxu0 0.0
    %457 = vmatpush1.msra.mxu0 %v330
    %458 = vmatprep.subr.mxu0 0.0
    %459 = vmatpush1.msra.mxu0 %v333
    %460 = vmatprep.subr.mxu0 0.0
    %461 = vmatpush1.msra.mxu0 %v336
    %462 = vmatprep.subr.mxu0 0.0
    %463 = vmatpush1.msra.mxu0 %v339
    %464 = vmatprep.subr.mxu0 0.0
    %465 = vmatpush1.msra.mxu0 %v342
    %466 = vmatprep.subr.mxu0 0.0
    %467 = vmatpush1.msra.mxu0 %v345
    %468 = vmatprep.subr.mxu0 0.0
    %469 = vmatpush1.msra.mxu0 %v348
    %470 = vmatprep.subr.mxu0 0.0
    %471 = vmatpush1.msra.mxu0 %v351
    %472 = vmatprep.subr.mxu0 0.0
    %473 = vmatpush1.msra.mxu0 0.0
    %474 = vmatprep.subr.mxu0 0.0
    %475 = vmatpush1.msra.mxu0 0.0
    %476 = vmatprep.subr.mxu0 0.0
    %477 = vmatpush1.msra.mxu0 0.0
    %478 = vmatprep.subr.mxu0 0.0
    %479 = vmatpush1.msra.mxu0 0.0
    %480 = vmatprep.subr.mxu0 0.0
    %481 = vmatpush1.msra.mxu0 0.0
    %482 = vmatprep.subr.mxu0 0.0
    %483 = vmatpush1.msra.mxu0 0.0
    %484 = vmatprep.subr.mxu0 0.0
    %485 = vmatpush1.msra.mxu0 0.0
    %486 = vmatprep.subr.mxu0 0.0
    %487 = vmatpush1.msra.mxu0 0.0
    %488 = vmatprep.subr.mxu0 0.0
    %489 = vmatpush1.msra.mxu0 0.0
    %490 = vmatprep.subr.mxu0 0.0
    %491 = vmatpush1.msra.mxu0 0.0
    %492 = vmatprep.subr.mxu0 0.0
    %493 = vmatpush1.msra.mxu0 0.0
    %494 = vmatprep.subr.mxu0 0.0
    %495 = vmatpush1.msra.mxu0 0.0
    %496 = vmatprep.subr.mxu0 0.0
    %497 = vmatpush1.msra.mxu0 0.0
    %498 = vmatprep.subr.mxu0 0.0
    %499 = vmatpush1.msra.mxu0 0.0
    %500 = vmatprep.subr.mxu0 0.0
    %501 = vmatpush1.msra.mxu0 0.0
    %502 = vmatprep.subr.mxu0 0.0
    %503 = vmatpush1.msra.mxu0 0.0
    %504 = vmatprep.mubr.f32.mxu0 0.0
    %505 = vmatmul.mubr.f32.gmra.mrb[0].mxu0 %v303
    %v506 = vpop.f32.mrb[0].mxu0
    %v507 = vadd.f32 %v365, %v506
    %v508 = vpop.f32.mrb[0].mxu0
    %509 = vdwg.mxu0
    %v510 = vmax.f32 %v507, 0.0
    %v511 = vand.u32 2147483647, %v507
    %v512 = vsub.f32 0.0, %v511
    %v513 = vmul.f32 %v512, 1.442695
    %v514 = vpow.pop %v513
    %v515 = vadd.f32 %v514, 1.0
    %v516 = vlog2.pop %v515
    %v517 = vmul.f32 %v516, 0.6931472
    %v518 = vmul.f32 -0.5, %v514
    %v519 = vadd.f32 %v518, 1.0
    %v520 = vmul.f32 %v519, %v514
    %v521 = vand.u32 2147483647, %v514
    %vm522 = vcmp.lt.f32.partialorder %v521, 0.0004427343
    %v523 = vsel %vm522, %v520, %v517
    %v524 = vadd.f32 %v510, %v523
    %v525 = vadd.f32 %v524, 0.001
    %v526 = vld [vmem:[%s1] sm:$0xff]
    %v527 = vmul.f32 %v436, %v436
    %v528 = vmul.f32 %v436, %v438
    %v529 = vmul.f32 %v438, %v438
    %v530 = vmul.f32 %v436, 2.0
    %v531 = vmul.f32 %v530, %v525
    %v532 = vadd.f32 %v529, %v531
    %v533 = vmul.f32 %v438, %v525
    %v534 = vmul.f32 %v525, %v525
    %v535 = vmul.f32 %v527, 0.2
    %v536 = vmul.f32 %v528, 0.5
    %v537 = vmul.f32 %v532, 0.33333334
    %v538 = vadd.f32 %v534, 0.001
    %v539 = vadd.f32 %v535, %v536
    %v540 = vadd.f32 %v539, %v537
    %v541 = vadd.f32 %v540, %v533
    %v542 = vadd.f32 %v541, %v534
    %v543 = vadd.f32 %v542, 0.001
    %545 = vset.pattern.permute.xlu0 0
    %546 = vperm.xlu0 %545, %v526
    %v547 = vpop.permute.xlu0 %546
    %v549 = vmul.f32 %v547, %v535
    %v550 = vadd.f32 %v536, %v549
    %v551 = vmul.f32 %v547, %v550
    %v552 = vadd.f32 %v537, %v551
    %v553 = vmul.f32 %v547, %v552
    %v554 = vadd.f32 %v533, %v553
    %v555 = vmul.f32 %v547, %v554
    %v556 = vadd.f32 %v538, %v555
    %v557 = vmul.f32 %v547, %v556
    %v558 = vmul.f32 %v533, 2.0
    %v559 = vmul.f32 %v528, 2.0
    %v560 = vmul.f32 %v547, %v527
    %v561 = vadd.f32 %v559, %v560
    %v562 = vmul.f32 %v547, %v561
    %v563 = vadd.f32 %v532, %v562
    %v564 = vmul.f32 %v547, %v563
    %v565 = vadd.f32 %v558, %v564
    %v566 = vmul.f32 %v547, %v565
    %v567 = vadd.f32 %v534, %v566
    %v568 = vrcp.pop %v543
    %v569 = vrcp.pop %v542
    %v570 = vmul.f32 %v557, %v568
    %v571 = vmul.f32 %v570, 20.0
    %v572 = vadd.f32 %v571, -10.0
    %573 = vst [vmem:[#allocation10] sm:$0xff] %v572
    %v574 = vmul.f32 %v567, %v569
    %v575 = vmul.f32 %v574, 20.0
    %v576 = vmax.f32 %v575, 0.001
    %577 = vst [vmem:[#allocation11] sm:$0xff] %v576
    // Predicated region
    $region50: #{tpu_custom_call.1} parent=1 // pred_check
      _
    $region51: #{tpu_custom_call.1} parent=1 // pred_check_branch
      %579 = sbr.rel (0) target = $region53
    $region52: #{tpu_custom_call.1} parent=1 // pred_region
      %s581 = ssub.s32 128, 128
      %582 = vsyncadd [#allocation4], %s581
      %s584 = sshll.u32 [#allocation10], 4
      %s585 = int_to_ptr.vmem [resolvable:$true] %s584
      %587 = dma.vmem_to_hbm [thread:$0]  %s585, 128, %s8, [#allocation4]
    $region53: #{tpu_custom_call.1} parent=1 // pred_fallthru
      _
    // Predicated region
    $region54: #{tpu_custom_call.1} parent=1 // pred_check
      _
    $region55: #{tpu_custom_call.1} parent=1 // pred_check_branch
      %589 = sbr.rel (0) target = $region57
    $region56: #{tpu_custom_call.1} parent=1 // pred_region
      %s591 = ssub.s32 128, 128
      %592 = vsyncadd [#allocation12], %s591
      %s594 = sshll.u32 [#allocation11], 4
      %s595 = int_to_ptr.vmem [resolvable:$true] %s594
      %597 = dma.vmem_to_hbm [thread:$0]  %s595, 128, %s9, [#allocation12]
    $region57: #{tpu_custom_call.1} parent=1 // pred_fallthru
      _
    // Predicated region
    $region58: #{tpu_custom_call.1} parent=1 // pred_check
      _
    $region59: #{tpu_custom_call.1} parent=1 // pred_check_branch
      %599 = sbr.rel (0) target = $region61
    $region60: #{tpu_custom_call.1} parent=1 // pred_region
      %600 = dma.done [#allocation4], 128
    $region61: #{tpu_custom_call.1} parent=1 // pred_fallthru
      _
    // Predicated region
    $region62: #{tpu_custom_call.1} parent=1 // pred_check
      _
    $region63: #{tpu_custom_call.1} parent=1 // pred_check_branch
      %602 = sbr.rel (0) target = $region65
    $region64: #{tpu_custom_call.1} parent=1 // pred_region
      %603 = dma.done [#allocation12], 128
    $region65: #{tpu_custom_call.1} parent=1 // pred_fallthru
      _
    %604 = vsyncpa [#allocation3], 1
    %605 = vsyncpa [#allocation6], 1
    %606 = vsyncpa [#allocation9], 1
    %607 = vsyncpa [#allocation4], 1
    %608 = vsyncpa [#allocation12], 1

</llo_original>
